<compile_context>
chip_gen: v7x
topology: tpu7x:2x2x1
jax: 0.10.0
libtpu: 0.0.40
codegen_flags: <defaults>
</compile_context>

<pallas_src>
import functools

import jax
import jax.numpy as jnp
from jax.experimental import pallas as pl
from jax.experimental.pallas import tpu as pltpu


def _conv1x1_bias_relu(w_ref, b_ref, diff, *, small_c):
    """ReLU(W @ diff + b).  W: (C_out, C_in), diff: (C_in, bh), b: (C_out, 1)."""
    if small_c:
        # Tiny C: C_in broadcast-multiply-adds on the VPU (MXU would be ~3% utilized).
        w = w_ref[...]
        c_in = diff.shape[0]
        acc = w[:, 0:1] * diff[0:1, :]
        for ci in range(1, c_in):
            acc = acc + w[:, ci:ci + 1] * diff[ci:ci + 1, :]
    else:
        acc = jnp.dot(w_ref[...], diff, preferred_element_type=jnp.float32)
    return jnp.maximum(acc + b_ref[...], 0.0)


def split_update_kernel(s_ref, hsi_ref, dsm_ref,
                        wr_ref, br_ref, wt_ref, bt_ref, eca_ref,
                        out_h_ref, out_d_ref,
                        acc_h, acc_d,
                        *, inv_hw, small_c):
    """Grid = (B, phase, HW tiles); phase 0 accumulates GAP, phase 1 writes outputs.

    s_ref/hsi_ref/dsm_ref : (1, C, bh)   inputs (lane-dense HW tile)
    wr_ref/wt_ref         : (C, C)       conv1x1 weight with BN scale folded in
    br_ref/bt_ref         : (C, 1)       folded bias
    eca_ref               : (2,) SMEM    [eca_w, eca_b]
    out_h_ref/out_d_ref   : (1, C, bh)   new_HSI / new_DSM tile
    acc_h/acc_d           : (C, 1) VMEM  per-channel running sums of s_X
    """
    p = pl.program_id(1)           # 0: GAP-accumulate pass, 1: apply pass
    t = pl.program_id(2)           # HW tile index

    s = s_ref[0]                   # (C, bh)
    hsi = hsi_ref[0]
    dsm = dsm_ref[0]

    @pl.when(jnp.logical_and(p == 0, t == 0))
    def _():
        acc_h[...] = jnp.zeros_like(acc_h)
        acc_d[...] = jnp.zeros_like(acc_d)

    @pl.when(p == 0)
    def _():
        th = _conv1x1_bias_relu(wr_ref, br_ref, s - hsi, small_c=small_c)
        td = _conv1x1_bias_relu(wt_ref, bt_ref, s - dsm, small_c=small_c)
        acc_h[...] += jnp.sum(th, axis=1, keepdims=True)
        acc_d[...] += jnp.sum(td, axis=1, keepdims=True)

    @pl.when(p == 1)
    def _():
        ew = eca_ref[0]
        eb = eca_ref[1]
        att_h = jax.nn.sigmoid(ew * (acc_h[...] * inv_hw) + eb)     # (C, 1)
        att_d = jax.nn.sigmoid(ew * (acc_d[...] * inv_hw) + eb)
        th = _conv1x1_bias_relu(wr_ref, br_ref, s - hsi, small_c=small_c)
        td = _conv1x1_bias_relu(wt_ref, bt_ref, s - dsm, small_c=small_c)
        out_h_ref[0] = (th * (1.0 + att_h) + hsi).astype(out_h_ref.dtype)
        out_d_ref[0] = (td * (1.0 + att_d) + dsm).astype(out_d_ref.dtype)


def _fold_branch(p, eps=1e-5):
    """Fold eval-mode BN into the 1x1 conv: w' = scale*w, b' = scale*(b - rm) + beta."""
    scale = p["gamma"] / jnp.sqrt(p["rv"] + eps)                        # (C,)
    w = (p["conv_w"] * scale[:, None]).astype(jnp.float32)              # (C_out, C_in)
    b = ((p["conv_b"] - p["rm"]) * scale + p["beta"]).astype(jnp.float32)
    return w, b[:, None]                                                # (C, C), (C, 1)


def _pick_block_hw(hw, target=2048):
    """Largest multiple of 128 dividing HW, capped at `target` (VMEM-bounded, v7x-safe)."""
    if hw % 128 != 0:
        return hw                       # full extent (allowed by BlockSpec rule)
    bh = max(128, min(target, (hw // 128) * 128))
    while hw % bh != 0:
        bh -= 128
    return bh


def split_update_forward(HSI, S, DSM, params, *, block_hw=None):
    """Inputs are NCHW, mirroring the PyTorch module.  Returns (new_HSI, new_DSM, S)."""
    B, C, H, W = HSI.shape
    HW = H * W
    dtype = HSI.dtype

    if block_hw is None:
        block_hw = _pick_block_hw(HW)
    if block_hw != HW and (HW % block_hw != 0 or block_hw % 128 != 0):
        raise ValueError(f"block_hw={block_hw} must be a multiple of 128 dividing HW={HW}")
    n_hw = HW // block_hw

    # NCHW -> (B, C, HW) is a free reshape (no transpose, no data movement).
    s_k = S.reshape(B, C, HW)
    h_k = HSI.reshape(B, C, HW)
    d_k = DSM.reshape(B, C, HW)

    w_r, b_r = _fold_branch(params["rgb"])
    w_t, b_t = _fold_branch(params["t"])
    eca = jnp.stack([jnp.reshape(params["eca_w"], ()),
                     jnp.reshape(params["eca_b"], ())]).astype(jnp.float32)

    small_c = C <= 16
    kernel = functools.partial(split_update_kernel,
                               inv_hw=1.0 / float(HW), small_c=small_c)

    tile_spec = pl.BlockSpec((1, C, block_hw), lambda b, p, t: (b, 0, t))
    # During phase 0 the output block index is pinned to tile 0 so no stale
    # writeback happens; phase 1 walks the tiles and writes real data.
    out_spec = pl.BlockSpec((1, C, block_hw), lambda b, p, t: (b, 0, t * p))
    w_spec = pl.BlockSpec((C, C), lambda b, p, t: (0, 0))
    b_spec = pl.BlockSpec((C, 1), lambda b, p, t: (0, 0))

    new_h, new_d = pl.pallas_call(
        kernel,
        out_shape=(jax.ShapeDtypeStruct((B, C, HW), dtype),
                   jax.ShapeDtypeStruct((B, C, HW), dtype)),
        grid_spec=pltpu.PrefetchScalarGridSpec(
            num_scalar_prefetch=0,
            grid=(B, 2, n_hw),
            in_specs=[
                tile_spec, tile_spec, tile_spec,          # S, HSI, DSM
                w_spec, b_spec,                           # rgb branch params
                w_spec, b_spec,                           # t branch params
                pl.BlockSpec(memory_space=pltpu.MemorySpace.SMEM),   # [eca_w, eca_b]
            ],
            out_specs=[out_spec, out_spec],
            scratch_shapes=[pltpu.VMEM((C, 1), jnp.float32),
                            pltpu.VMEM((C, 1), jnp.float32)],
        ),
        compiler_params=pltpu.CompilerParams(
            dimension_semantics=("parallel", "arbitrary", "arbitrary")),
        # TODO(synk): optional bf16 HBM storage (f32 accumulate) would halve DMA
        # bytes on v6e/v7x; kept f32 here to match the module's f32 semantics.
    )(s_k, h_k, d_k, w_r, b_r, w_t, b_t, eca)

    return new_h.reshape(B, C, H, W), new_d.reshape(B, C, H, W), S


# ----------------- pure-JAX reference (for correctness check) -----------------
def _ref_branch(diff, base, p, eca_w, eca_b, eps=1e-5):
    t = jnp.einsum("bchw,oc->bohw", diff, p["conv_w"]) + p["conv_b"][None, :, None, None]
    t = (t - p["rm"][None, :, None, None]) / jnp.sqrt(p["rv"] + eps)[None, :, None, None]
    t = t * p["gamma"][None, :, None, None] + p["beta"][None, :, None, None]
    t = jnp.maximum(t, 0.0)
    gap = jnp.mean(t, axis=(2, 3), keepdims=True)
    att = jax.nn.sigmoid(eca_w * gap + eca_b)
    return t * (1.0 + att) + base


def _ref_forward(HSI, S, DSM, params):
    nh = _ref_branch(S - HSI, HSI, params["rgb"], params["eca_w"], params["eca_b"])
    nd = _ref_branch(S - DSM, DSM, params["t"], params["eca_w"], params["eca_b"])
    return nh, nd, S


if __name__ == "__main__":
    B, C, H, W = 2, 4, 16, 16
    key = jax.random.PRNGKey(0)
    ks = jax.random.split(key, 16)

    HSI = jax.random.normal(ks[0], (B, C, H, W), jnp.float32)
    S = jax.random.normal(ks[1], (B, C, H, W), jnp.float32)
    DSM = jax.random.normal(ks[2], (B, C, H, W), jnp.float32)

    def make_branch_params(k):
        kk = jax.random.split(k, 6)
        return {
            "conv_w": 0.2 * jax.random.normal(kk[0], (C, C), jnp.float32),   # (out, in) 1x1
            "conv_b": 0.1 * jax.random.normal(kk[1], (C,), jnp.float32),
            "gamma": 1.0 + 0.1 * jax.random.normal(kk[2], (C,), jnp.float32),
            "beta": 0.1 * jax.random.normal(kk[3], (C,), jnp.float32),
            "rm": 0.05 * jax.random.normal(kk[4], (C,), jnp.float32),
            "rv": jnp.abs(1.0 + 0.1 * jax.random.normal(kk[5], (C,), jnp.float32)),
        }

    params = {
        "rgb": make_branch_params(ks[3]),
        "t": make_branch_params(ks[4]),
        "eca_w": 0.5 * jax.random.normal(ks[5], (), jnp.float32),   # conv1d(1,1,k=1) weight
        "eca_b": 0.1 * jax.random.normal(ks[6], (), jnp.float32),   # conv1d bias
    }

    # block_hw=128 -> HW=256 split into 2 lane-dense tiles (exercises the tiled
    # two-pass GAP path); default picker would use a single 256-wide tile.
    new_HSI, new_DSM, S_out = split_update_forward(HSI, S, DSM, params, block_hw=128)
    jax.block_until_ready((new_HSI, new_DSM, S_out))

    ref_HSI, ref_DSM, _ = _ref_forward(HSI, S, DSM, params)
    assert jnp.allclose(new_HSI, ref_HSI, atol=1e-4, rtol=1e-4)
    assert jnp.allclose(new_DSM, ref_DSM, atol=1e-4, rtol=1e-4)
    assert jnp.array_equal(S_out, S)

    print("KERNEL_OK")
</pallas_src>

<mosaic_0001>
module attributes {stable_mosaic.version = 11 : i64} {
  func.func @split_update_kernel(%arg0: i32, %arg1: i32, %arg2: i32, %arg3: memref<1x4x128xf32, #tpu.memory_space<vmem>>, %arg4: memref<1x4x128xf32, #tpu.memory_space<vmem>>, %arg5: memref<1x4x128xf32, #tpu.memory_space<vmem>>, %arg6: memref<4x4xf32, #tpu.memory_space<vmem>>, %arg7: memref<4x1xf32, #tpu.memory_space<vmem>>, %arg8: memref<4x4xf32, #tpu.memory_space<vmem>>, %arg9: memref<4x1xf32, #tpu.memory_space<vmem>>, %arg10: memref<2xf32, #tpu.memory_space<smem>>, %arg11: memref<1x4x128xf32, #tpu.memory_space<vmem>>, %arg12: memref<1x4x128xf32, #tpu.memory_space<vmem>>, %arg13: memref<4x1xf32, #tpu.memory_space<vmem>>, %arg14: memref<4x1xf32, #tpu.memory_space<vmem>>) attributes {dimension_semantics = [#tpu.dimension_semantics<parallel>, #tpu.dimension_semantics<arbitrary>, #tpu.dimension_semantics<arbitrary>], iteration_bounds = array<i64: 2, 2, 2>, scalar_prefetch = 0 : i64, scratch_operands = 2 : i64, tpu.core_type = #tpu.core_type<tc>, window_params = [{transform_indices = @transform_0, window_bounds = array<i64: 1, 4, 128>}, {transform_indices = @transform_1, window_bounds = array<i64: 1, 4, 128>}, {transform_indices = @transform_2, window_bounds = array<i64: 1, 4, 128>}, {pipeline_mode = #tpu.pipeline_mode<synchronous>, transform_indices = @transform_3, window_bounds = array<i64: 4, 4>}, {pipeline_mode = #tpu.pipeline_mode<synchronous>, transform_indices = @transform_4, window_bounds = array<i64: 4, 1>}, {pipeline_mode = #tpu.pipeline_mode<synchronous>, transform_indices = @transform_5, window_bounds = array<i64: 4, 4>}, {pipeline_mode = #tpu.pipeline_mode<synchronous>, transform_indices = @transform_6, window_bounds = array<i64: 4, 1>}, {transform_indices = @transform_7, window_bounds = array<i64: 2>}, {transform_indices = @transform_8, window_bounds = array<i64: 1, 4, 128>}, {transform_indices = @transform_9, window_bounds = array<i64: 1, 4, 128>}]} {
    %c0 = arith.constant 0 : index
    %c0_0 = arith.constant 0 : index
    %c0_1 = arith.constant 0 : index
    %0 = vector.load %arg3[%c0, %c0_0, %c0_1] : memref<1x4x128xf32, #tpu.memory_space<vmem>>, vector<1x4x128xf32>
    %1 = vector.shape_cast %0 : vector<1x4x128xf32> to vector<4x128xf32>
    %c0_2 = arith.constant 0 : index
    %c0_3 = arith.constant 0 : index
    %c0_4 = arith.constant 0 : index
    %2 = vector.load %arg4[%c0_2, %c0_3, %c0_4] : memref<1x4x128xf32, #tpu.memory_space<vmem>>, vector<1x4x128xf32>
    %3 = vector.shape_cast %2 : vector<1x4x128xf32> to vector<4x128xf32>
    %c0_5 = arith.constant 0 : index
    %c0_6 = arith.constant 0 : index
    %c0_7 = arith.constant 0 : index
    %4 = vector.load %arg5[%c0_5, %c0_6, %c0_7] : memref<1x4x128xf32, #tpu.memory_space<vmem>>, vector<1x4x128xf32>
    %5 = vector.shape_cast %4 : vector<1x4x128xf32> to vector<4x128xf32>
    %c0_i32 = arith.constant 0 : i32
    %6 = arith.cmpi eq, %arg1, %c0_i32 : i32
    %c0_i32_8 = arith.constant 0 : i32
    %7 = arith.cmpi eq, %arg2, %c0_i32_8 : i32
    %8 = arith.andi %6, %7 : i1
    %9 = arith.extui %8 : i1 to i32
    %c0_i32_9 = arith.constant 0 : i32
    %10 = arith.cmpi ne, %9, %c0_i32_9 : i32
    scf.if %10 {
      %cst = arith.constant 0.000000e+00 : f32
      %17 = vector.broadcast %cst : f32 to vector<4x1xf32>
      %c0_13 = arith.constant 0 : index
      %c0_14 = arith.constant 0 : index
      %18 = vector.load %arg13[%c0_13, %c0_14] : memref<4x1xf32, #tpu.memory_space<vmem>>, vector<4x1xf32>
      tpu.vector_store %arg13[%c0_13, %c0_14], %17 {strides = array<i32>} : memref<4x1xf32, #tpu.memory_space<vmem>>, vector<4x1xf32>,
      %cst_15 = arith.constant 0.000000e+00 : f32
      %19 = vector.broadcast %cst_15 : f32 to vector<4x1xf32>
      %c0_16 = arith.constant 0 : index
      %c0_17 = arith.constant 0 : index
      %20 = vector.load %arg14[%c0_16, %c0_17] : memref<4x1xf32, #tpu.memory_space<vmem>>, vector<4x1xf32>
      tpu.vector_store %arg14[%c0_16, %c0_17], %19 {strides = array<i32>} : memref<4x1xf32, #tpu.memory_space<vmem>>, vector<4x1xf32>,
    } else {
    }
    %c0_i32_10 = arith.constant 0 : i32
    %11 = arith.cmpi eq, %arg1, %c0_i32_10 : i32
    %12 = arith.extui %11 : i1 to i32
    %c0_i32_11 = arith.constant 0 : i32
    %13 = arith.cmpi ne, %12, %c0_i32_11 : i32
    scf.if %13 {
      %17 = arith.subf %1, %3 : vector<4x128xf32>
      %c0_13 = arith.constant 0 : index
      %c0_14 = arith.constant 0 : index
      %18 = vector.load %arg6[%c0_13, %c0_14] : memref<4x4xf32, #tpu.memory_space<vmem>>, vector<4x4xf32>
      %19 = vector.extract_strided_slice %18 {offsets = [0, 0], sizes = [4, 1], strides = [1, 1]} : vector<4x4xf32> to vector<4x1xf32>
      %20 = vector.extract_strided_slice %17 {offsets = [0, 0], sizes = [1, 128], strides = [1, 1]} : vector<4x128xf32> to vector<1x128xf32>
      %21 = vector.broadcast %19 : vector<4x1xf32> to vector<4x128xf32>
      %22 = vector.broadcast %20 : vector<1x128xf32> to vector<4x128xf32>
      %23 = arith.mulf %21, %22 : vector<4x128xf32>
      %24 = vector.extract_strided_slice %18 {offsets = [0, 1], sizes = [4, 1], strides = [1, 1]} : vector<4x4xf32> to vector<4x1xf32>
      %25 = vector.extract_strided_slice %17 {offsets = [1, 0], sizes = [1, 128], strides = [1, 1]} : vector<4x128xf32> to vector<1x128xf32>
      %26 = vector.broadcast %24 : vector<4x1xf32> to vector<4x128xf32>
      %27 = vector.broadcast %25 : vector<1x128xf32> to vector<4x128xf32>
      %28 = arith.mulf %26, %27 : vector<4x128xf32>
      %29 = arith.addf %23, %28 : vector<4x128xf32>
      %30 = vector.extract_strided_slice %18 {offsets = [0, 2], sizes = [4, 1], strides = [1, 1]} : vector<4x4xf32> to vector<4x1xf32>
      %31 = vector.extract_strided_slice %17 {offsets = [2, 0], sizes = [1, 128], strides = [1, 1]} : vector<4x128xf32> to vector<1x128xf32>
      %32 = vector.broadcast %30 : vector<4x1xf32> to vector<4x128xf32>
      %33 = vector.broadcast %31 : vector<1x128xf32> to vector<4x128xf32>
      %34 = arith.mulf %32, %33 : vector<4x128xf32>
      %35 = arith.addf %29, %34 : vector<4x128xf32>
      %36 = vector.extract_strided_slice %18 {offsets = [0, 3], sizes = [4, 1], strides = [1, 1]} : vector<4x4xf32> to vector<4x1xf32>
      %37 = vector.extract_strided_slice %17 {offsets = [3, 0], sizes = [1, 128], strides = [1, 1]} : vector<4x128xf32> to vector<1x128xf32>
      %38 = vector.broadcast %36 : vector<4x1xf32> to vector<4x128xf32>
      %39 = vector.broadcast %37 : vector<1x128xf32> to vector<4x128xf32>
      %40 = arith.mulf %38, %39 : vector<4x128xf32>
      %41 = arith.addf %35, %40 : vector<4x128xf32>
      %c0_15 = arith.constant 0 : index
      %c0_16 = arith.constant 0 : index
      %42 = vector.load %arg7[%c0_15, %c0_16] : memref<4x1xf32, #tpu.memory_space<vmem>>, vector<4x1xf32>
      %43 = vector.broadcast %42 : vector<4x1xf32> to vector<4x128xf32>
      %44 = arith.addf %41, %43 : vector<4x128xf32>
      %cst = arith.constant 0.000000e+00 : f32
      %45 = vector.broadcast %cst : f32 to vector<4x128xf32>
      %46 = arith.maximumf %44, %45 : vector<4x128xf32>
      %47 = arith.subf %1, %5 : vector<4x128xf32>
      %c0_17 = arith.constant 0 : index
      %c0_18 = arith.constant 0 : index
      %48 = vector.load %arg8[%c0_17, %c0_18] : memref<4x4xf32, #tpu.memory_space<vmem>>, vector<4x4xf32>
      %49 = vector.extract_strided_slice %48 {offsets = [0, 0], sizes = [4, 1], strides = [1, 1]} : vector<4x4xf32> to vector<4x1xf32>
      %50 = vector.extract_strided_slice %47 {offsets = [0, 0], sizes = [1, 128], strides = [1, 1]} : vector<4x128xf32> to vector<1x128xf32>
      %51 = vector.broadcast %49 : vector<4x1xf32> to vector<4x128xf32>
      %52 = vector.broadcast %50 : vector<1x128xf32> to vector<4x128xf32>
      %53 = arith.mulf %51, %52 : vector<4x128xf32>
      %54 = vector.extract_strided_slice %48 {offsets = [0, 1], sizes = [4, 1], strides = [1, 1]} : vector<4x4xf32> to vector<4x1xf32>
      %55 = vector.extract_strided_slice %47 {offsets = [1, 0], sizes = [1, 128], strides = [1, 1]} : vector<4x128xf32> to vector<1x128xf32>
      %56 = vector.broadcast %54 : vector<4x1xf32> to vector<4x128xf32>
      %57 = vector.broadcast %55 : vector<1x128xf32> to vector<4x128xf32>
      %58 = arith.mulf %56, %57 : vector<4x128xf32>
      %59 = arith.addf %53, %58 : vector<4x128xf32>
      %60 = vector.extract_strided_slice %48 {offsets = [0, 2], sizes = [4, 1], strides = [1, 1]} : vector<4x4xf32> to vector<4x1xf32>
      %61 = vector.extract_strided_slice %47 {offsets = [2, 0], sizes = [1, 128], strides = [1, 1]} : vector<4x128xf32> to vector<1x128xf32>
      %62 = vector.broadcast %60 : vector<4x1xf32> to vector<4x128xf32>
      %63 = vector.broadcast %61 : vector<1x128xf32> to vector<4x128xf32>
      %64 = arith.mulf %62, %63 : vector<4x128xf32>
      %65 = arith.addf %59, %64 : vector<4x128xf32>
      %66 = vector.extract_strided_slice %48 {offsets = [0, 3], sizes = [4, 1], strides = [1, 1]} : vector<4x4xf32> to vector<4x1xf32>
      %67 = vector.extract_strided_slice %47 {offsets = [3, 0], sizes = [1, 128], strides = [1, 1]} : vector<4x128xf32> to vector<1x128xf32>
      %68 = vector.broadcast %66 : vector<4x1xf32> to vector<4x128xf32>
      %69 = vector.broadcast %67 : vector<1x128xf32> to vector<4x128xf32>
      %70 = arith.mulf %68, %69 : vector<4x128xf32>
      %71 = arith.addf %65, %70 : vector<4x128xf32>
      %c0_19 = arith.constant 0 : index
      %c0_20 = arith.constant 0 : index
      %72 = vector.load %arg9[%c0_19, %c0_20] : memref<4x1xf32, #tpu.memory_space<vmem>>, vector<4x1xf32>
      %73 = vector.broadcast %72 : vector<4x1xf32> to vector<4x128xf32>
      %74 = arith.addf %71, %73 : vector<4x128xf32>
      %cst_21 = arith.constant 0.000000e+00 : f32
      %75 = vector.broadcast %cst_21 : f32 to vector<4x128xf32>
      %76 = arith.maximumf %74, %75 : vector<4x128xf32>
      %c0_22 = arith.constant 0 : index
      %c0_23 = arith.constant 0 : index
      %77 = vector.load %arg13[%c0_22, %c0_23] : memref<4x1xf32, #tpu.memory_space<vmem>>, vector<4x1xf32>
      %cst_24 = arith.constant dense<0.000000e+00> : vector<4xf32>
      %78 = vector.multi_reduction <add>, %46, %cst_24 [1] : vector<4x128xf32> to vector<4xf32>
      %79 = vector.shape_cast %78 : vector<4xf32> to vector<4x1xf32>
      %80 = arith.addf %77, %79 : vector<4x1xf32>
      %c0_25 = arith.constant 0 : index
      %c0_26 = arith.constant 0 : index
      %81 = vector.load %arg13[%c0_25, %c0_26] : memref<4x1xf32, #tpu.memory_space<vmem>>, vector<4x1xf32>
      tpu.vector_store %arg13[%c0_25, %c0_26], %80 {strides = array<i32>} : memref<4x1xf32, #tpu.memory_space<vmem>>, vector<4x1xf32>,
      %c0_27 = arith.constant 0 : index
      %c0_28 = arith.constant 0 : index
      %82 = vector.load %arg14[%c0_27, %c0_28] : memref<4x1xf32, #tpu.memory_space<vmem>>, vector<4x1xf32>
      %cst_29 = arith.constant dense<0.000000e+00> : vector<4xf32>
      %83 = vector.multi_reduction <add>, %76, %cst_29 [1] : vector<4x128xf32> to vector<4xf32>
      %84 = vector.shape_cast %83 : vector<4xf32> to vector<4x1xf32>
      %85 = arith.addf %82, %84 : vector<4x1xf32>
      %c0_30 = arith.constant 0 : index
      %c0_31 = arith.constant 0 : index
      %86 = vector.load %arg14[%c0_30, %c0_31] : memref<4x1xf32, #tpu.memory_space<vmem>>, vector<4x1xf32>
      tpu.vector_store %arg14[%c0_30, %c0_31], %85 {strides = array<i32>} : memref<4x1xf32, #tpu.memory_space<vmem>>, vector<4x1xf32>,
    } else {
    }
    %c1_i32 = arith.constant 1 : i32
    %14 = arith.cmpi eq, %arg1, %c1_i32 : i32
    %15 = arith.extui %14 : i1 to i32
    %c0_i32_12 = arith.constant 0 : i32
    %16 = arith.cmpi ne, %15, %c0_i32_12 : i32
    scf.if %16 {
      %c0_13 = arith.constant 0 : index
      %17 = memref.load %arg10[%c0_13] : memref<2xf32, #tpu.memory_space<smem>>
      %c1 = arith.constant 1 : index
      %18 = memref.load %arg10[%c1] : memref<2xf32, #tpu.memory_space<smem>>
      %c0_14 = arith.constant 0 : index
      %c0_15 = arith.constant 0 : index
      %19 = vector.load %arg13[%c0_14, %c0_15] : memref<4x1xf32, #tpu.memory_space<vmem>>, vector<4x1xf32>
      %cst = arith.constant 3.906250e-03 : f32
      %20 = vector.broadcast %cst : f32 to vector<4x1xf32>
      %21 = arith.mulf %19, %20 : vector<4x1xf32>
      %22 = vector.broadcast %17 : f32 to vector<4x1xf32>
      %23 = arith.mulf %22, %21 : vector<4x1xf32>
      %24 = vector.broadcast %18 : f32 to vector<4x1xf32>
      %25 = arith.addf %23, %24 : vector<4x1xf32>
      %26 = arith.negf %25 : vector<4x1xf32>
      %27 = math.exp %26 : vector<4x1xf32>
      %cst_16 = arith.constant 1.000000e+00 : f32
      %28 = vector.broadcast %cst_16 : f32 to vector<4x1xf32>
      %29 = arith.addf %28, %27 : vector<4x1xf32>
      %30 = arith.divf %28, %29 : vector<4x1xf32>
      %c0_17 = arith.constant 0 : index
      %c0_18 = arith.constant 0 : index
      %31 = vector.load %arg14[%c0_17, %c0_18] : memref<4x1xf32, #tpu.memory_space<vmem>>, vector<4x1xf32>
      %cst_19 = arith.constant 3.906250e-03 : f32
      %32 = vector.broadcast %cst_19 : f32 to vector<4x1xf32>
      %33 = arith.mulf %31, %32 : vector<4x1xf32>
      %34 = vector.broadcast %17 : f32 to vector<4x1xf32>
      %35 = arith.mulf %34, %33 : vector<4x1xf32>
      %36 = vector.broadcast %18 : f32 to vector<4x1xf32>
      %37 = arith.addf %35, %36 : vector<4x1xf32>
      %38 = arith.negf %37 : vector<4x1xf32>
      %39 = math.exp %38 : vector<4x1xf32>
      %cst_20 = arith.constant 1.000000e+00 : f32
      %40 = vector.broadcast %cst_20 : f32 to vector<4x1xf32>
      %41 = arith.addf %40, %39 : vector<4x1xf32>
      %42 = arith.divf %40, %41 : vector<4x1xf32>
      %43 = arith.subf %1, %3 : vector<4x128xf32>
      %c0_21 = arith.constant 0 : index
      %c0_22 = arith.constant 0 : index
      %44 = vector.load %arg6[%c0_21, %c0_22] : memref<4x4xf32, #tpu.memory_space<vmem>>, vector<4x4xf32>
      %45 = vector.extract_strided_slice %44 {offsets = [0, 0], sizes = [4, 1], strides = [1, 1]} : vector<4x4xf32> to vector<4x1xf32>
      %46 = vector.extract_strided_slice %43 {offsets = [0, 0], sizes = [1, 128], strides = [1, 1]} : vector<4x128xf32> to vector<1x128xf32>
      %47 = vector.broadcast %45 : vector<4x1xf32> to vector<4x128xf32>
      %48 = vector.broadcast %46 : vector<1x128xf32> to vector<4x128xf32>
      %49 = arith.mulf %47, %48 : vector<4x128xf32>
      %50 = vector.extract_strided_slice %44 {offsets = [0, 1], sizes = [4, 1], strides = [1, 1]} : vector<4x4xf32> to vector<4x1xf32>
      %51 = vector.extract_strided_slice %43 {offsets = [1, 0], sizes = [1, 128], strides = [1, 1]} : vector<4x128xf32> to vector<1x128xf32>
      %52 = vector.broadcast %50 : vector<4x1xf32> to vector<4x128xf32>
      %53 = vector.broadcast %51 : vector<1x128xf32> to vector<4x128xf32>
      %54 = arith.mulf %52, %53 : vector<4x128xf32>
      %55 = arith.addf %49, %54 : vector<4x128xf32>
      %56 = vector.extract_strided_slice %44 {offsets = [0, 2], sizes = [4, 1], strides = [1, 1]} : vector<4x4xf32> to vector<4x1xf32>
      %57 = vector.extract_strided_slice %43 {offsets = [2, 0], sizes = [1, 128], strides = [1, 1]} : vector<4x128xf32> to vector<1x128xf32>
      %58 = vector.broadcast %56 : vector<4x1xf32> to vector<4x128xf32>
      %59 = vector.broadcast %57 : vector<1x128xf32> to vector<4x128xf32>
      %60 = arith.mulf %58, %59 : vector<4x128xf32>
      %61 = arith.addf %55, %60 : vector<4x128xf32>
      %62 = vector.extract_strided_slice %44 {offsets = [0, 3], sizes = [4, 1], strides = [1, 1]} : vector<4x4xf32> to vector<4x1xf32>
      %63 = vector.extract_strided_slice %43 {offsets = [3, 0], sizes = [1, 128], strides = [1, 1]} : vector<4x128xf32> to vector<1x128xf32>
      %64 = vector.broadcast %62 : vector<4x1xf32> to vector<4x128xf32>
      %65 = vector.broadcast %63 : vector<1x128xf32> to vector<4x128xf32>
      %66 = arith.mulf %64, %65 : vector<4x128xf32>
      %67 = arith.addf %61, %66 : vector<4x128xf32>
      %c0_23 = arith.constant 0 : index
      %c0_24 = arith.constant 0 : index
      %68 = vector.load %arg7[%c0_23, %c0_24] : memref<4x1xf32, #tpu.memory_space<vmem>>, vector<4x1xf32>
      %69 = vector.broadcast %68 : vector<4x1xf32> to vector<4x128xf32>
      %70 = arith.addf %67, %69 : vector<4x128xf32>
      %cst_25 = arith.constant 0.000000e+00 : f32
      %71 = vector.broadcast %cst_25 : f32 to vector<4x128xf32>
      %72 = arith.maximumf %70, %71 : vector<4x128xf32>
      %73 = arith.subf %1, %5 : vector<4x128xf32>
      %c0_26 = arith.constant 0 : index
      %c0_27 = arith.constant 0 : index
      %74 = vector.load %arg8[%c0_26, %c0_27] : memref<4x4xf32, #tpu.memory_space<vmem>>, vector<4x4xf32>
      %75 = vector.extract_strided_slice %74 {offsets = [0, 0], sizes = [4, 1], strides = [1, 1]} : vector<4x4xf32> to vector<4x1xf32>
      %76 = vector.extract_strided_slice %73 {offsets = [0, 0], sizes = [1, 128], strides = [1, 1]} : vector<4x128xf32> to vector<1x128xf32>
      %77 = vector.broadcast %75 : vector<4x1xf32> to vector<4x128xf32>
      %78 = vector.broadcast %76 : vector<1x128xf32> to vector<4x128xf32>
      %79 = arith.mulf %77, %78 : vector<4x128xf32>
      %80 = vector.extract_strided_slice %74 {offsets = [0, 1], sizes = [4, 1], strides = [1, 1]} : vector<4x4xf32> to vector<4x1xf32>
      %81 = vector.extract_strided_slice %73 {offsets = [1, 0], sizes = [1, 128], strides = [1, 1]} : vector<4x128xf32> to vector<1x128xf32>
      %82 = vector.broadcast %80 : vector<4x1xf32> to vector<4x128xf32>
      %83 = vector.broadcast %81 : vector<1x128xf32> to vector<4x128xf32>
      %84 = arith.mulf %82, %83 : vector<4x128xf32>
      %85 = arith.addf %79, %84 : vector<4x128xf32>
      %86 = vector.extract_strided_slice %74 {offsets = [0, 2], sizes = [4, 1], strides = [1, 1]} : vector<4x4xf32> to vector<4x1xf32>
      %87 = vector.extract_strided_slice %73 {offsets = [2, 0], sizes = [1, 128], strides = [1, 1]} : vector<4x128xf32> to vector<1x128xf32>
      %88 = vector.broadcast %86 : vector<4x1xf32> to vector<4x128xf32>
      %89 = vector.broadcast %87 : vector<1x128xf32> to vector<4x128xf32>
      %90 = arith.mulf %88, %89 : vector<4x128xf32>
      %91 = arith.addf %85, %90 : vector<4x128xf32>
      %92 = vector.extract_strided_slice %74 {offsets = [0, 3], sizes = [4, 1], strides = [1, 1]} : vector<4x4xf32> to vector<4x1xf32>
      %93 = vector.extract_strided_slice %73 {offsets = [3, 0], sizes = [1, 128], strides = [1, 1]} : vector<4x128xf32> to vector<1x128xf32>
      %94 = vector.broadcast %92 : vector<4x1xf32> to vector<4x128xf32>
      %95 = vector.broadcast %93 : vector<1x128xf32> to vector<4x128xf32>
      %96 = arith.mulf %94, %95 : vector<4x128xf32>
      %97 = arith.addf %91, %96 : vector<4x128xf32>
      %c0_28 = arith.constant 0 : index
      %c0_29 = arith.constant 0 : index
      %98 = vector.load %arg9[%c0_28, %c0_29] : memref<4x1xf32, #tpu.memory_space<vmem>>, vector<4x1xf32>
      %99 = vector.broadcast %98 : vector<4x1xf32> to vector<4x128xf32>
      %100 = arith.addf %97, %99 : vector<4x128xf32>
      %cst_30 = arith.constant 0.000000e+00 : f32
      %101 = vector.broadcast %cst_30 : f32 to vector<4x128xf32>
      %102 = arith.maximumf %100, %101 : vector<4x128xf32>
      %cst_31 = arith.constant 1.000000e+00 : f32
      %103 = vector.broadcast %cst_31 : f32 to vector<4x1xf32>
      %104 = arith.addf %103, %30 : vector<4x1xf32>
      %105 = vector.broadcast %104 : vector<4x1xf32> to vector<4x128xf32>
      %106 = arith.mulf %72, %105 : vector<4x128xf32>
      %107 = arith.addf %106, %3 : vector<4x128xf32>
      %c0_32 = arith.constant 0 : index
      %c0_33 = arith.constant 0 : index
      %c0_34 = arith.constant 0 : index
      %108 = vector.load %arg11[%c0_32, %c0_33, %c0_34] : memref<1x4x128xf32, #tpu.memory_space<vmem>>, vector<1x4x128xf32>
      %109 = vector.shape_cast %108 : vector<1x4x128xf32> to vector<4x128xf32>
      %110 = vector.shape_cast %107 : vector<4x128xf32> to vector<1x4x128xf32>
      tpu.vector_store %arg11[%c0_32, %c0_33, %c0_34], %110 {strides = array<i32>} : memref<1x4x128xf32, #tpu.memory_space<vmem>>, vector<1x4x128xf32>,
      %cst_35 = arith.constant 1.000000e+00 : f32
      %111 = vector.broadcast %cst_35 : f32 to vector<4x1xf32>
      %112 = arith.addf %111, %42 : vector<4x1xf32>
      %113 = vector.broadcast %112 : vector<4x1xf32> to vector<4x128xf32>
      %114 = arith.mulf %102, %113 : vector<4x128xf32>
      %115 = arith.addf %114, %5 : vector<4x128xf32>
      %c0_36 = arith.constant 0 : index
      %c0_37 = arith.constant 0 : index
      %c0_38 = arith.constant 0 : index
      %116 = vector.load %arg12[%c0_36, %c0_37, %c0_38] : memref<1x4x128xf32, #tpu.memory_space<vmem>>, vector<1x4x128xf32>
      %117 = vector.shape_cast %116 : vector<1x4x128xf32> to vector<4x128xf32>
      %118 = vector.shape_cast %115 : vector<4x128xf32> to vector<1x4x128xf32>
      tpu.vector_store %arg12[%c0_36, %c0_37, %c0_38], %118 {strides = array<i32>} : memref<1x4x128xf32, #tpu.memory_space<vmem>>, vector<1x4x128xf32>,
    } else {
    }
    return
  }
  func.func @transform_0(%arg0: i32, %arg1: i32, %arg2: i32) -> (i32, i32, i32) {
    %c0_i32 = arith.constant 0 : i32
    %c0_i32_0 = arith.constant 0 : i32
    return %arg0, %c0_i32, %arg2 : i32, i32, i32
  }
  func.func @transform_1(%arg0: i32, %arg1: i32, %arg2: i32) -> (i32, i32, i32) {
    %c0_i32 = arith.constant 0 : i32
    %c0_i32_0 = arith.constant 0 : i32
    return %arg0, %c0_i32, %arg2 : i32, i32, i32
  }
  func.func @transform_2(%arg0: i32, %arg1: i32, %arg2: i32) -> (i32, i32, i32) {
    %c0_i32 = arith.constant 0 : i32
    %c0_i32_0 = arith.constant 0 : i32
    return %arg0, %c0_i32, %arg2 : i32, i32, i32
  }
  func.func @transform_3(%arg0: i32, %arg1: i32, %arg2: i32) -> (i32, i32) {
    %c0_i32 = arith.constant 0 : i32
    %c0_i32_0 = arith.constant 0 : i32
    %c0_i32_1 = arith.constant 0 : i32
    return %c0_i32, %c0_i32_0 : i32, i32
  }
  func.func @transform_4(%arg0: i32, %arg1: i32, %arg2: i32) -> (i32, i32) {
    %c0_i32 = arith.constant 0 : i32
    %c0_i32_0 = arith.constant 0 : i32
    %c0_i32_1 = arith.constant 0 : i32
    return %c0_i32, %c0_i32_0 : i32, i32
  }
  func.func @transform_5(%arg0: i32, %arg1: i32, %arg2: i32) -> (i32, i32) {
    %c0_i32 = arith.constant 0 : i32
    %c0_i32_0 = arith.constant 0 : i32
    %c0_i32_1 = arith.constant 0 : i32
    return %c0_i32, %c0_i32_0 : i32, i32
  }
  func.func @transform_6(%arg0: i32, %arg1: i32, %arg2: i32) -> (i32, i32) {
    %c0_i32 = arith.constant 0 : i32
    %c0_i32_0 = arith.constant 0 : i32
    %c0_i32_1 = arith.constant 0 : i32
    return %c0_i32, %c0_i32_0 : i32, i32
  }
  func.func @transform_7(%arg0: i32, %arg1: i32, %arg2: i32) -> i32 {
    %c0_i32 = arith.constant 0 : i32
    %c0_i32_0 = arith.constant 0 : i32
    return %c0_i32 : i32
  }
  func.func @transform_8(%arg0: i32, %arg1: i32, %arg2: i32) -> (i32, i32, i32) {
    %0 = arith.muli %arg2, %arg1 : i32
    %c0_i32 = arith.constant 0 : i32
    %c0_i32_0 = arith.constant 0 : i32
    return %arg0, %c0_i32, %0 : i32, i32, i32
  }
  func.func @transform_9(%arg0: i32, %arg1: i32, %arg2: i32) -> (i32, i32, i32) {
    %0 = arith.muli %arg2, %arg1 : i32
    %c0_i32 = arith.constant 0 : i32
    %c0_i32_0 = arith.constant 0 : i32
    return %arg0, %c0_i32, %0 : i32, i32, i32
  }
}

</mosaic_0001>

<llo_original>
// kernel: tpu_custom_call.1
$region0: #{tpu_custom_call.1}
  #allocation0 [shape = 'u32[]', space=smem, size = 0x4, offset = 0x4, fixed_abs, tag = 'smem constant byte address 0x4 - core index']
  #allocation1 [shape = 'u32[144,128]{1,0:T(1,128)}', space=vmem, size = 0x12000, scoped, tag = 'internal scratch']
  #allocation2 [shape = 'f32[4,1]{1,0:T(4,128)}', space=vmem, size = 0x800, scoped, tag = 'scratch operand']
  #allocation3 [shape = 'f32[4,1]{1,0:T(4,128)}', space=vmem, size = 0x800, scoped, tag = 'scratch operand']
  %s0 = inlined_call_operand.hbm [shape: f32[2,4,256], index: 0, kind: input, shape index: {}]
  %s1 = inlined_call_operand.hbm [shape: f32[2,4,256], index: 1, kind: input, shape index: {}]
  %s2 = inlined_call_operand.vmem [shape: f32[2,4,256], index: 2, kind: input, shape index: {}]
  %s3 = inlined_call_operand.vmem [shape: f32[4,4], index: 3, kind: input, shape index: {}]
  %s4 = inlined_call_operand.vmem [shape: f32[4,1], index: 4, kind: input, shape index: {}]
  %s5 = inlined_call_operand.vmem [shape: f32[4,4], index: 5, kind: input, shape index: {}]
  %s6 = inlined_call_operand.vmem [shape: f32[4,1], index: 6, kind: input, shape index: {}]
  %s7 = inlined_call_operand.vmem [shape: f32[2], index: 7, kind: input, shape index: {}]
  %s8 = inlined_call_operand.hbm [shape: f32[2,4,256], index: 8, kind: output, shape index: {0}]
  %s9 = inlined_call_operand.hbm [shape: f32[2,4,256], index: 9, kind: output, shape index: {1}]
  %10 = xla_tuple %s8, %s9
  %s11 = sld [smem:[#allocation0]]
  $region97: #{tpu_custom_call.1} parent=0
    _
  %s13 = ssub.s32 1, %s11
  %s14 = scalar_select 0, %s13, %s11
  $region1: #{tpu_custom_call.1} parent=0
    #allocation4 [shape = 'u8[4096]{0}', space=vmem, size = 0x1000, scoped, tag = 'input window, operand 0']
    #allocation5 [shape = 's32[2]{0}', space=sflag, size = 0x8, scoped, tag = 'scoped memory for tpu_custom_call.1']
    #allocation6 [shape = 's32[2]{0}', space=sflag, size = 0x8, scoped, tag = 'scoped memory for tpu_custom_call.1']
    #allocation7 [shape = 's32[2]{0}', space=sflag, size = 0x8, scoped, tag = 'scoped memory for tpu_custom_call.1']
    #allocation8 [shape = 'u8[4096]{0}', space=vmem, size = 0x1000, scoped, tag = 'input window, operand 1']
    #allocation9 [shape = 's32[2]{0}', space=sflag, size = 0x8, scoped, tag = 'scoped memory for tpu_custom_call.1']
    #allocation10 [shape = 'u8[512]{0}', space=smem, size = 0x200, scoped, tag = 'input window, operand 7, single buffered']
    #allocation11 [shape = 'u8[4096]{0}', space=vmem, size = 0x1000, scoped, tag = 'output window, operand 0']
    #allocation12 [shape = 'u8[4096]{0}', space=vmem, size = 0x1000, scoped, tag = 'output window, operand 1']
    #allocation13 [shape = 's32[2]{0}', space=sflag, size = 0x8, scoped, tag = 'scoped memory for tpu_custom_call.1']
    %15 = vsyncpa [#allocation5], 0
    %s16 = scalar_lea.sflag [#allocation5], 1
    %17 = vsyncpa %s16, 0
    %18 = vsyncpa [#allocation9], 0
    %s19 = scalar_lea.sflag [#allocation9], 1
    %20 = vsyncpa %s19, 0
    %21 = vsyncpa [#allocation7], 0
    %22 = vsyncpa [#allocation6], 0
    %s23 = scalar_lea.sflag [#allocation6], 1
    %24 = vsyncpa %s23, 0
    %25 = vsyncpa [#allocation13], 0
    %s26 = scalar_lea.sflag [#allocation13], 1
    %27 = vsyncpa %s26, 0
    loop: start=0, step=1, limit=10
    $region2: #{tpu_custom_call.1} parent=1 // loop_pre_header
      _
    $region3: #{tpu_custom_call.1} parent=1 // loop_header
      %s29 = sphi 0, %s33
      %p30 = scmp.ge.s32.totalorder %s29, 10
      %s36 = sphi 0, %s55
      %s37 = sphi 0, %s51
      %s38 = sphi 0, %s47
      %s39 = sphi 0, %s36
      %s40 = sphi 0, %s37
      %s41 = sphi 0, %s38
      %s42 = sphi 0, %s39
      %s43 = sphi 0, %s40
      %s44 = sphi 0, %s41
      %s60 = sphi 0, %s62
      %s63 = sphi 0, %s60
      %s64 = sphi 0, %s63
      %s80 = sphi 0, %s64
      %s88 = sphi 0, %s90
      %s91 = sphi 0, %s88
      %s92 = sphi 0, %s91
      %s108 = sphi 0, %s92
      %s116 = sphi 0, %s118
      %s119 = sphi 0, %s116
      %s120 = sphi 0, %s119
      %s136 = sphi 0, %s120
      %s140 = sphi 0, %s140
      %s142 = sphi 0, %s140
      %s143 = sphi 0, %s142
      %s157 = sphi 0, %s143
      %s161 = sphi 0, %s161
      %s163 = sphi 0, %s161
      %s164 = sphi 0, %s163
      %s178 = sphi 0, %s164
      %s182 = sphi 0, %s182
      %s184 = sphi 0, %s182
      %s185 = sphi 0, %s184
      %s199 = sphi 0, %s185
      %s203 = sphi 0, %s203
      %s205 = sphi 0, %s203
      %s206 = sphi 0, %s205
      %s220 = sphi 0, %s206
      %s224 = sphi 0, %s224
      %s226 = sphi 0, %s224
      %s227 = sphi 0, %s226
      %s241 = sphi 0, %s227
      %s251 = sphi 0, %s253
      %s254 = sphi 0, %s251
      %s255 = sphi 0, %s254
      %s271 = sphi 0, %s255
      %s281 = sphi 0, %s283
      %s284 = sphi 0, %s281
      %s285 = sphi 0, %s284
      %s301 = sphi 0, %s285
    $region4: #{tpu_custom_call.1} parent=1 // loop_header_branch
      %32 = sbr.rel (%p30) target = $region8
    $region5: #{tpu_custom_call.1} parent=1 // loop_body
      %s34 = ssub.s32 %s29, 1
      %s35 = ssub.s32 %s29, 2
      %s45 = sadd.s32 1, %s38
      %p46 = scmp.ge.s32.totalorder %s45, 2
      %s47 = scalar_select %p46, 0, %s45
      %s48 = sadd.s32 1, %s37
      %s49 = scalar_select %p46, %s48, %s37
      %p50 = scmp.ge.s32.totalorder %s49, 2
      %s51 = scalar_select %p50, 0, %s49
      %s52 = sadd.s32 1, %s36
      %s53 = scalar_select %p50, %s52, %s36
      %p54 = scmp.ge.s32.totalorder %s53, 2
      %s55 = scalar_select %p54, 0, %s53
      %s56 = ssub.s32 %s36, %s55
      %s57 = ssub.s32 %s38, %s47
      %s58 = sor.u32 %s56, %s57
      %p59 = scmp.eq.s32.totalorder %s58, 0
      %s61 = sadd.s32 %s60, 1
      %s62 = scalar_select %p59, %s60, %s61
      %p65 = pneg %p59
      %p66 = scmp.eq.s32.totalorder %s29, 7
      %p67 = por %p65, %p66
      %p68 = scmp.ne.s32.totalorder %s60, %s63
      %p69 = scmp.eq.s32.totalorder %s29, 0
      %p70 = por %p68, %p69
      %p71 = scmp.ne.s32.totalorder %s60, %s63
      %p72 = scmp.eq.s32.totalorder %s34, 7
      %p73 = por %p71, %p72
      %p74 = scmp.ne.s32.totalorder %s63, %s64
      %p75 = scmp.eq.s32.totalorder %s34, 0
      %p76 = por %p74, %p75
      %p77 = scmp.ne.s32.totalorder %s63, %s64
      %p78 = scmp.eq.s32.totalorder %s35, 7
      %p79 = por %p77, %p78
      %p81 = scmp.ne.s32.totalorder %s64, %s80
      %p82 = scmp.eq.s32.totalorder %s35, 0
      %p83 = por %p81, %p82
      %s84 = ssub.s32 %s36, %s55
      %s85 = ssub.s32 %s38, %s47
      %s86 = sor.u32 %s84, %s85
      %p87 = scmp.eq.s32.totalorder %s86, 0
      %s89 = sadd.s32 %s88, 1
      %s90 = scalar_select %p87, %s88, %s89
      %p93 = pneg %p87
      %p94 = scmp.eq.s32.totalorder %s29, 7
      %p95 = por %p93, %p94
      %p96 = scmp.ne.s32.totalorder %s88, %s91
      %p97 = scmp.eq.s32.totalorder %s29, 0
      %p98 = por %p96, %p97
      %p99 = scmp.ne.s32.totalorder %s88, %s91
      %p100 = scmp.eq.s32.totalorder %s34, 7
      %p101 = por %p99, %p100
      %p102 = scmp.ne.s32.totalorder %s91, %s92
      %p103 = scmp.eq.s32.totalorder %s34, 0
      %p104 = por %p102, %p103
      %p105 = scmp.ne.s32.totalorder %s91, %s92
      %p106 = scmp.eq.s32.totalorder %s35, 7
      %p107 = por %p105, %p106
      %p109 = scmp.ne.s32.totalorder %s92, %s108
      %p110 = scmp.eq.s32.totalorder %s35, 0
      %p111 = por %p109, %p110
      %s112 = ssub.s32 %s36, %s55
      %s113 = ssub.s32 %s38, %s47
      %s114 = sor.u32 %s112, %s113
      %p115 = scmp.eq.s32.totalorder %s114, 0
      %s117 = sadd.s32 %s116, 1
      %s118 = scalar_select %p115, %s116, %s117
      %p121 = pneg %p115
      %p122 = scmp.eq.s32.totalorder %s29, 7
      %p123 = por %p121, %p122
      %p124 = scmp.ne.s32.totalorder %s116, %s119
      %p125 = scmp.eq.s32.totalorder %s29, 0
      %p126 = por %p124, %p125
      %p127 = scmp.ne.s32.totalorder %s116, %s119
      %p128 = scmp.eq.s32.totalorder %s34, 7
      %p129 = por %p127, %p128
      %p130 = scmp.ne.s32.totalorder %s119, %s120
      %p131 = scmp.eq.s32.totalorder %s34, 0
      %p132 = por %p130, %p131
      %p133 = scmp.ne.s32.totalorder %s119, %s120
      %p134 = scmp.eq.s32.totalorder %s35, 7
      %p135 = por %p133, %p134
      %p137 = scmp.ne.s32.totalorder %s120, %s136
      %p138 = scmp.eq.s32.totalorder %s35, 0
      %p139 = por %p137, %p138
      %s141 = sadd.s32 %s140, 1
      %p144 = scmp.eq.s32.totalorder %s29, 7
      %p145 = scmp.ne.s32.totalorder %s140, %s142
      %p146 = scmp.eq.s32.totalorder %s29, 0
      %p147 = por %p145, %p146
      %p148 = scmp.ne.s32.totalorder %s140, %s142
      %p149 = scmp.eq.s32.totalorder %s34, 7
      %p150 = por %p148, %p149
      %p151 = scmp.ne.s32.totalorder %s142, %s143
      %p152 = scmp.eq.s32.totalorder %s34, 0
      %p153 = por %p151, %p152
      %p154 = scmp.ne.s32.totalorder %s142, %s143
      %p155 = scmp.eq.s32.totalorder %s35, 7
      %p156 = por %p154, %p155
      %p158 = scmp.ne.s32.totalorder %s143, %s157
      %p159 = scmp.eq.s32.totalorder %s35, 0
      %p160 = por %p158, %p159
      %s162 = sadd.s32 %s161, 1
      %p165 = scmp.eq.s32.totalorder %s29, 7
      %p166 = scmp.ne.s32.totalorder %s161, %s163
      %p167 = scmp.eq.s32.totalorder %s29, 0
      %p168 = por %p166, %p167
      %p169 = scmp.ne.s32.totalorder %s161, %s163
      %p170 = scmp.eq.s32.totalorder %s34, 7
      %p171 = por %p169, %p170
      %p172 = scmp.ne.s32.totalorder %s163, %s164
      %p173 = scmp.eq.s32.totalorder %s34, 0
      %p174 = por %p172, %p173
      %p175 = scmp.ne.s32.totalorder %s163, %s164
      %p176 = scmp.eq.s32.totalorder %s35, 7
      %p177 = por %p175, %p176
      %p179 = scmp.ne.s32.totalorder %s164, %s178
      %p180 = scmp.eq.s32.totalorder %s35, 0
      %p181 = por %p179, %p180
      %s183 = sadd.s32 %s182, 1
      %p186 = scmp.eq.s32.totalorder %s29, 7
      %p187 = scmp.ne.s32.totalorder %s182, %s184
      %p188 = scmp.eq.s32.totalorder %s29, 0
      %p189 = por %p187, %p188
      %p190 = scmp.ne.s32.totalorder %s182, %s184
      %p191 = scmp.eq.s32.totalorder %s34, 7
      %p192 = por %p190, %p191
      %p193 = scmp.ne.s32.totalorder %s184, %s185
      %p194 = scmp.eq.s32.totalorder %s34, 0
      %p195 = por %p193, %p194
      %p196 = scmp.ne.s32.totalorder %s184, %s185
      %p197 = scmp.eq.s32.totalorder %s35, 7
      %p198 = por %p196, %p197
      %p200 = scmp.ne.s32.totalorder %s185, %s199
      %p201 = scmp.eq.s32.totalorder %s35, 0
      %p202 = por %p200, %p201
      %s204 = sadd.s32 %s203, 1
      %p207 = scmp.eq.s32.totalorder %s29, 7
      %p208 = scmp.ne.s32.totalorder %s203, %s205
      %p209 = scmp.eq.s32.totalorder %s29, 0
      %p210 = por %p208, %p209
      %p211 = scmp.ne.s32.totalorder %s203, %s205
      %p212 = scmp.eq.s32.totalorder %s34, 7
      %p213 = por %p211, %p212
      %p214 = scmp.ne.s32.totalorder %s205, %s206
      %p215 = scmp.eq.s32.totalorder %s34, 0
      %p216 = por %p214, %p215
      %p217 = scmp.ne.s32.totalorder %s205, %s206
      %p218 = scmp.eq.s32.totalorder %s35, 7
      %p219 = por %p217, %p218
      %p221 = scmp.ne.s32.totalorder %s206, %s220
      %p222 = scmp.eq.s32.totalorder %s35, 0
      %p223 = por %p221, %p222
      %s225 = sadd.s32 %s224, 1
      %p228 = scmp.eq.s32.totalorder %s29, 7
      %p229 = scmp.ne.s32.totalorder %s224, %s226
      %p230 = scmp.eq.s32.totalorder %s29, 0
      %p231 = por %p229, %p230
      %p232 = scmp.ne.s32.totalorder %s224, %s226
      %p233 = scmp.eq.s32.totalorder %s34, 7
      %p234 = por %p232, %p233
      %p235 = scmp.ne.s32.totalorder %s226, %s227
      %p236 = scmp.eq.s32.totalorder %s34, 0
      %p237 = por %p235, %p236
      %p238 = scmp.ne.s32.totalorder %s226, %s227
      %p239 = scmp.eq.s32.totalorder %s35, 7
      %p240 = por %p238, %p239
      %p242 = scmp.ne.s32.totalorder %s227, %s241
      %p243 = scmp.eq.s32.totalorder %s35, 0
      %p244 = por %p242, %p243
      %s245 = smul.u32 %s38, %s37
      %s246 = smul.u32 %s47, %s51
      %s247 = ssub.s32 %s36, %s55
      %s248 = ssub.s32 %s245, %s246
      %s249 = sor.u32 %s247, %s248
      %p250 = scmp.eq.s32.totalorder %s249, 0
      %s252 = sadd.s32 %s251, 1
      %s253 = scalar_select %p250, %s251, %s252
      %p256 = pneg %p250
      %p257 = scmp.eq.s32.totalorder %s29, 7
      %p258 = por %p256, %p257
      %p259 = scmp.ne.s32.totalorder %s251, %s254
      %p260 = scmp.eq.s32.totalorder %s29, 0
      %p261 = por %p259, %p260
      %p262 = scmp.ne.s32.totalorder %s251, %s254
      %p263 = scmp.eq.s32.totalorder %s34, 7
      %p264 = por %p262, %p263
      %p265 = scmp.ne.s32.totalorder %s254, %s255
      %p266 = scmp.eq.s32.totalorder %s34, 0
      %p267 = por %p265, %p266
      %p268 = scmp.ne.s32.totalorder %s254, %s255
      %p269 = scmp.eq.s32.totalorder %s35, 7
      %p270 = por %p268, %p269
      %p272 = scmp.ne.s32.totalorder %s255, %s271
      %p273 = scmp.eq.s32.totalorder %s35, 0
      %p274 = por %p272, %p273
      %s275 = smul.u32 %s38, %s37
      %s276 = smul.u32 %s47, %s51
      %s277 = ssub.s32 %s36, %s55
      %s278 = ssub.s32 %s275, %s276
      %s279 = sor.u32 %s277, %s278
      %p280 = scmp.eq.s32.totalorder %s279, 0
      %s282 = sadd.s32 %s281, 1
      %s283 = scalar_select %p280, %s281, %s282
      %p286 = pneg %p280
      %p287 = scmp.eq.s32.totalorder %s29, 7
      %p288 = por %p286, %p287
      %p289 = scmp.ne.s32.totalorder %s281, %s284
      %p290 = scmp.eq.s32.totalorder %s29, 0
      %p291 = por %p289, %p290
      %p292 = scmp.ne.s32.totalorder %s281, %s284
      %p293 = scmp.eq.s32.totalorder %s34, 7
      %p294 = por %p292, %p293
      %p295 = scmp.ne.s32.totalorder %s284, %s285
      %p296 = scmp.eq.s32.totalorder %s34, 0
      %p297 = por %p295, %p296
      %p298 = scmp.ne.s32.totalorder %s284, %s285
      %p299 = scmp.eq.s32.totalorder %s35, 7
      %p300 = por %p298, %p299
      %p302 = scmp.ne.s32.totalorder %s285, %s301
      %p303 = scmp.eq.s32.totalorder %s35, 0
      %p304 = por %p302, %p303
      %p305 = scmp.le.s32.totalorder 1, %s29
      %p306 = scmp.lt.s32.totalorder %s29, 9
      %p307 = pnand %p305, %p306
      %p308 = pneg %p307
      // Predicated region
      $region9: #{tpu_custom_call.1} parent=5 // pred_check
        _
      $region10: #{tpu_custom_call.1} parent=5 // pred_check_branch
        %310 = sbr.rel (%p307) target = $region12
      $region11: #{tpu_custom_call.1} parent=5 // pred_region
        %s311 = ssub.s32 %s29, 1
        // Predicated region
        $region13: #{tpu_custom_call.1} parent=11 // pred_check
          %p312 = pneg %p153
        $region14: #{tpu_custom_call.1} parent=11 // pred_check_branch
          %314 = sbr.rel (%p312) target = $region16
        $region15: #{tpu_custom_call.1} parent=11 // pred_region
          _
        $region16: #{tpu_custom_call.1} parent=11 // pred_fallthru
          _
        // Predicated region
        $region17: #{tpu_custom_call.1} parent=11 // pred_check
          %p315 = pneg %p174
        $region18: #{tpu_custom_call.1} parent=11 // pred_check_branch
          %317 = sbr.rel (%p315) target = $region20
        $region19: #{tpu_custom_call.1} parent=11 // pred_region
          _
        $region20: #{tpu_custom_call.1} parent=11 // pred_fallthru
          _
        // Predicated region
        $region21: #{tpu_custom_call.1} parent=11 // pred_check
          %p318 = pneg %p195
        $region22: #{tpu_custom_call.1} parent=11 // pred_check_branch
          %320 = sbr.rel (%p318) target = $region24
        $region23: #{tpu_custom_call.1} parent=11 // pred_region
          _
        $region24: #{tpu_custom_call.1} parent=11 // pred_fallthru
          _
        // Predicated region
        $region25: #{tpu_custom_call.1} parent=11 // pred_check
          %p321 = pneg %p216
        $region26: #{tpu_custom_call.1} parent=11 // pred_check_branch
          %323 = sbr.rel (%p321) target = $region28
        $region27: #{tpu_custom_call.1} parent=11 // pred_region
          _
        $region28: #{tpu_custom_call.1} parent=11 // pred_fallthru
          _
        // Predicated region
        $region29: #{tpu_custom_call.1} parent=11 // pred_check
          %p324 = pneg %p237
        $region30: #{tpu_custom_call.1} parent=11 // pred_check_branch
          %326 = sbr.rel (%p324) target = $region32
        $region31: #{tpu_custom_call.1} parent=11 // pred_region
          %s328 = ssub.s32 16, 16
          %329 = vsyncadd [#allocation7], %s328
          %s331 = sshll.u32 %s7, 4
          %s332 = int_to_ptr.vmem [resolvable:$true] %s331
          %334 = dma.vmem_to_smem %s332, 16, [#allocation10], [#allocation7]
        $region32: #{tpu_custom_call.1} parent=11 // pred_fallthru
          _
      $region12: #{tpu_custom_call.1} parent=5 // pred_fallthru
        _
      %p335 = scmp.lt.s32.totalorder %s29, 8
      // Predicated region
      $region33: #{tpu_custom_call.1} parent=5 // pred_check
        %p336 = pneg %p335
      $region34: #{tpu_custom_call.1} parent=5 // pred_check_branch
        %338 = sbr.rel (%p336) target = $region36
      $region35: #{tpu_custom_call.1} parent=5 // pred_region
        // Predicated region
        $region37: #{tpu_custom_call.1} parent=35 // pred_check
          %p339 = pneg %p70
        $region38: #{tpu_custom_call.1} parent=35 // pred_check_branch
          %341 = sbr.rel (%p339) target = $region40
        $region39: #{tpu_custom_call.1} parent=35 // pred_region
          %s342 = sand.u32 %s60, 1
          %s343 = scalar_lea.sflag [#allocation5], %s342
          %s344 = sand.u32 %s60, 1
          %s345 = smul.addr %s344, 4
          %s346 = scalar_lea.vmem [#allocation4], %s345
          %s348 = ssub.s32 64, 64
          %349 = vsyncadd %s343, %s348
          %s350 = smul.addr %s36, 2
          %s351 = sadd.s32 %s38, %s350
          %s352 = smul.addr %s351, 64
          %s353 = scalar_lea.hbm %s0, %s352
          %s355 = sshll.u32 %s346, 4
          %s356 = int_to_ptr.vmem [resolvable:$true] %s355
          %358 = dma.hbm_to_vmem [thread:$0]  %s353, 64, %s356, %s343
        $region40: #{tpu_custom_call.1} parent=35 // pred_fallthru
          _
        // Predicated region
        $region41: #{tpu_custom_call.1} parent=35 // pred_check
          %p359 = pneg %p98
        $region42: #{tpu_custom_call.1} parent=35 // pred_check_branch
          %361 = sbr.rel (%p359) target = $region44
        $region43: #{tpu_custom_call.1} parent=35 // pred_region
          %s362 = sand.u32 %s88, 1
          %s363 = scalar_lea.sflag [#allocation9], %s362
          %s364 = sand.u32 %s88, 1
          %s365 = smul.addr %s364, 4
          %s366 = scalar_lea.vmem [#allocation8], %s365
          %s368 = ssub.s32 64, 64
          %369 = vsyncadd %s363, %s368
          %s370 = smul.addr %s36, 2
          %s371 = sadd.s32 %s38, %s370
          %s372 = smul.addr %s371, 64
          %s373 = scalar_lea.hbm %s1, %s372
          %s375 = sshll.u32 %s366, 4
          %s376 = int_to_ptr.vmem [resolvable:$true] %s375
          %378 = dma.hbm_to_vmem [thread:$0]  %s373, 64, %s376, %s363
        $region44: #{tpu_custom_call.1} parent=35 // pred_fallthru
          _
        // Predicated region
        $region45: #{tpu_custom_call.1} parent=35 // pred_check
          %p379 = pneg %p126
        $region46: #{tpu_custom_call.1} parent=35 // pred_check_branch
          %381 = sbr.rel (%p379) target = $region48
        $region47: #{tpu_custom_call.1} parent=35 // pred_region
          %p382 = scmp.lt.s32.totalorder %s36, 1
          %s383 = scalar_select %p382, %s36, 1
          %p384 = scmp.lt.s32.totalorder %s38, 1
          %s385 = scalar_select %p384, %s38, 1
          %s386 = smul.addr %s383, 2
          %s387 = sadd.s32 %s385, %s386
          %s388 = smul.addr %s387, 4
          %s389 = scalar_lea.vmem %s2, %s388
        $region48: #{tpu_custom_call.1} parent=35 // pred_fallthru
          _
      $region36: #{tpu_custom_call.1} parent=5 // pred_fallthru
        _
      %p390 = scmp.le.s32.totalorder 1, %s29
      %p391 = scmp.lt.s32.totalorder %s29, 9
      %p392 = pnand %p390, %p391
      %p393 = pneg %p392
      // Predicated region
      $region49: #{tpu_custom_call.1} parent=5 // pred_check
        _
      $region50: #{tpu_custom_call.1} parent=5 // pred_check_branch
        %395 = sbr.rel (%p392) target = $region52
      $region51: #{tpu_custom_call.1} parent=5 // pred_region
        %s396 = ssub.s32 %s29, 1
        %s397 = sand.u32 %s63, 1
        %s398 = scalar_lea.sflag [#allocation5], %s397
        %s399 = sand.u32 %s63, 1
        %s400 = smul.addr %s399, 4
        %s401 = scalar_lea.vmem [#allocation4], %s400
        // Predicated region
        $region53: #{tpu_custom_call.1} parent=51 // pred_check
          %p402 = pneg %p76
        $region54: #{tpu_custom_call.1} parent=51 // pred_check_branch
          %404 = sbr.rel (%p402) target = $region56
        $region55: #{tpu_custom_call.1} parent=51 // pred_region
          %405 = dma.done %s398, 64
        $region56: #{tpu_custom_call.1} parent=51 // pred_fallthru
          _
        %s406 = sand.u32 %s91, 1
        %s407 = scalar_lea.sflag [#allocation9], %s406
        %s408 = sand.u32 %s91, 1
        %s409 = smul.addr %s408, 4
        %s410 = scalar_lea.vmem [#allocation8], %s409
        // Predicated region
        $region57: #{tpu_custom_call.1} parent=51 // pred_check
          %p411 = pneg %p104
        $region58: #{tpu_custom_call.1} parent=51 // pred_check_branch
          %413 = sbr.rel (%p411) target = $region60
        $region59: #{tpu_custom_call.1} parent=51 // pred_region
          %414 = dma.done %s407, 64
        $region60: #{tpu_custom_call.1} parent=51 // pred_fallthru
          _
        // Predicated region
        $region61: #{tpu_custom_call.1} parent=51 // pred_check
          %p415 = pneg %p237
        $region62: #{tpu_custom_call.1} parent=51 // pred_check_branch
          %417 = sbr.rel (%p415) target = $region64
        $region63: #{tpu_custom_call.1} parent=51 // pred_region
          %418 = dma.done [#allocation7], 16
        $region64: #{tpu_custom_call.1} parent=51 // pred_fallthru
          _
        %419 = sfence
        %s420 = sand.u32 %s63, 1
        %s421 = scalar_lea.sflag [#allocation5], %s420
        %s422 = sand.u32 %s63, 1
        %s423 = smul.addr %s422, 4
        %s424 = scalar_lea.vmem [#allocation4], %s423
        %p425 = pneg %p76
        %p426 = pneg %p73
        %s427 = sand.u32 %s91, 1
        %s428 = scalar_lea.sflag [#allocation9], %s427
        %s429 = sand.u32 %s91, 1
        %s430 = smul.addr %s429, 4
        %s431 = scalar_lea.vmem [#allocation8], %s430
        %p432 = pneg %p104
        %p433 = pneg %p101
        %p434 = scmp.lt.s32.totalorder %s39, 1
        %s435 = scalar_select %p434, %s39, 1
        %p436 = scmp.lt.s32.totalorder %s41, 1
        %s437 = scalar_select %p436, %s41, 1
        %s438 = smul.addr %s435, 2
        %s439 = sadd.s32 %s437, %s438
        %s440 = smul.addr %s439, 4
        %s441 = scalar_lea.vmem %s2, %s440
        %p442 = pneg %p132
        %p443 = pneg %p129
        %p444 = pneg %p153
        %p445 = pneg %p150
        %p446 = pneg %p174
        %p447 = pneg %p171
        %p448 = pneg %p195
        %p449 = pneg %p192
        %p450 = pneg %p216
        %p451 = pneg %p213
        %p452 = pneg %p237
        %p453 = pneg %p234
        %p454 = pneg %p267
        %p455 = pneg %p264
        %s456 = sand.u32 %s254, 1
        %s457 = scalar_lea.sflag [#allocation6], %s456
        %s458 = sand.u32 %s254, 1
        %s459 = smul.addr %s458, 4
        %s460 = scalar_lea.vmem [#allocation11], %s459
        %p461 = pneg %p297
        %p462 = pneg %p294
        %s463 = sand.u32 %s284, 1
        %s464 = scalar_lea.sflag [#allocation13], %s463
        %s465 = sand.u32 %s284, 1
        %s466 = smul.addr %s465, 4
        %s467 = scalar_lea.vmem [#allocation12], %s466
        %p468 = scmp.lt.s32.totalorder %s39, 1
        %s469 = scalar_select %p468, %s39, 1
        %p470 = scmp.lt.s32.totalorder %s41, 1
        %s471 = scalar_select %p470, %s41, 1
        %s472 = smul.addr %s469, 2
        %s473 = sadd.s32 %s471, %s472
        %s474 = smul.addr %s473, 4
        %s475 = scalar_lea.vmem %s2, %s474
        %s476 = smul.u32 %s41, %s40
        %s477 = smul.u32 %s41, %s40
        %v478 = vld [vmem:[%s401] sm:$0xf]
        %v479 = vld [vmem:[%s410] sm:$0xf]
        %v480 = vld [vmem:[%s475] sm:$0xf]
        %p481 = scmp.eq.s32.totalorder %s40, 0
        %p482 = scmp.eq.s32.totalorder %s41, 0
        %p483 = pnand %p481, %p482
        %p484 = pneg %p483
        // Predicated region
        $region65: #{tpu_custom_call.1} parent=51 // pred_check
          _
        $region66: #{tpu_custom_call.1} parent=51 // pred_check_branch
          %486 = sbr.rel (%p483) target = $region68
        $region67: #{tpu_custom_call.1} parent=51 // pred_region
          %vm487 = vcmask 3072
          %488 = vst.msk [vmem:[#allocation2] sm:$0xf] %vm487, 0.0
          %489 = vst.msk [vmem:[#allocation3] sm:$0xf] %vm487, 0.0
        $region68: #{tpu_custom_call.1} parent=51 // pred_fallthru
          _
        // Predicated region
        $region69: #{tpu_custom_call.1} parent=51 // pred_check
          %p490 = pneg %p481
        $region70: #{tpu_custom_call.1} parent=51 // pred_check_branch
          %492 = sbr.rel (%p490) target = $region72
        $region71: #{tpu_custom_call.1} parent=51 // pred_region
          %v493 = vsub.f32 %v478, %v479
          %v494 = vld [vmem:[%s3] sm:$0xf]
          %496 = vset.pattern.permute.xlu0 0
          %497 = vperm.xlu0 %496, %v494
          %v498 = vpop.permute.xlu0 %497
          %v500 = vlaneseq
          %v501 = vshrl.u32 %v500, 7
          %v502 = vsub.s32 0, %v501
          %v503 = vrot.slane %v493, %v502
          %v504 = vmul.f32 %v498, %v503
          %505 = vset.pattern.permute.xlu0 1
          %506 = vperm.xlu0 %505, %v494
          %v507 = vpop.permute.xlu0 %506
          %v509 = vlaneseq
          %v510 = vshrl.u32 %v509, 7
          %v511 = vsub.s32 1, %v510
          %v512 = vrot.slane %v493, %v511
          %v513 = vmul.f32 %v507, %v512
          %v514 = vadd.f32 %v504, %v513
          %515 = vset.pattern.permute.xlu0 2
          %516 = vperm.xlu0 %515, %v494
          %v517 = vpop.permute.xlu0 %516
          %v519 = vlaneseq
          %v520 = vshrl.u32 %v519, 7
          %v521 = vsub.s32 2, %v520
          %v522 = vrot.slane %v493, %v521
          %v523 = vmul.f32 %v517, %v522
          %v524 = vadd.f32 %v514, %v523
          %525 = vset.pattern.permute.xlu0 3
          %526 = vperm.xlu0 %525, %v494
          %v527 = vpop.permute.xlu0 %526
          %v529 = vlaneseq
          %v530 = vshrl.u32 %v529, 7
          %v531 = vsub.s32 3, %v530
          %v532 = vrot.slane %v493, %v531
          %v533 = vmul.f32 %v527, %v532
          %v534 = vadd.f32 %v524, %v533
          %v535 = vld [vmem:[%s4] sm:$0xf]
          %537 = vset.pattern.permute.xlu0 0
          %538 = vperm.xlu0 %537, %v535
          %v539 = vpop.permute.xlu0 %538
          %v541 = vadd.f32 %v534, %v539
          %v542 = vmax.f32 %v541, 0.0
          %v543 = vsub.f32 %v478, %v480
          %v544 = vld [vmem:[%s5] sm:$0xf]
          %546 = vset.pattern.permute.xlu0 0
          %547 = vperm.xlu0 %546, %v544
          %v548 = vpop.permute.xlu0 %547
          %v550 = vlaneseq
          %v551 = vshrl.u32 %v550, 7
          %v552 = vsub.s32 0, %v551
          %v553 = vrot.slane %v543, %v552
          %v554 = vmul.f32 %v548, %v553
          %555 = vset.pattern.permute.xlu0 1
          %556 = vperm.xlu0 %555, %v544
          %v557 = vpop.permute.xlu0 %556
          %v559 = vlaneseq
          %v560 = vshrl.u32 %v559, 7
          %v561 = vsub.s32 1, %v560
          %v562 = vrot.slane %v543, %v561
          %v563 = vmul.f32 %v557, %v562
          %v564 = vadd.f32 %v554, %v563
          %565 = vset.pattern.permute.xlu0 2
          %566 = vperm.xlu0 %565, %v544
          %v567 = vpop.permute.xlu0 %566
          %v569 = vlaneseq
          %v570 = vshrl.u32 %v569, 7
          %v571 = vsub.s32 2, %v570
          %v572 = vrot.slane %v543, %v571
          %v573 = vmul.f32 %v567, %v572
          %v574 = vadd.f32 %v564, %v573
          %575 = vset.pattern.permute.xlu0 3
          %576 = vperm.xlu0 %575, %v544
          %v577 = vpop.permute.xlu0 %576
          %v579 = vlaneseq
          %v580 = vshrl.u32 %v579, 7
          %v581 = vsub.s32 3, %v580
          %v582 = vrot.slane %v543, %v581
          %v583 = vmul.f32 %v577, %v582
          %v584 = vadd.f32 %v574, %v583
          %v585 = vld [vmem:[%s6] sm:$0xf]
          %587 = vset.pattern.permute.xlu0 0
          %588 = vperm.xlu0 %587, %v585
          %v589 = vpop.permute.xlu0 %588
          %v591 = vadd.f32 %v584, %v589
          %v592 = vmax.f32 %v591, 0.0
          %v593 = vld [vmem:[#allocation2] sm:$0xf]
          %vm594 = vcmask 1043456
          %v595 = vsel %vm594, %v542, 0.0
          %596 = vadd.xlane.f32.xlu0 %v595
          %v597 = vpop.xlane.xlu0 %596
          %v598 = vadd.f32 %v593, %v597
          %vm599 = vcmask 3072
          %600 = vst.msk [vmem:[#allocation2] sm:$0xf] %vm599, %v598
          %v601 = vld [vmem:[#allocation3] sm:$0xf]
          %v602 = vsel %vm594, %v592, 0.0
          %603 = vadd.xlane.f32.xlu0 %v602
          %v604 = vpop.xlane.xlu0 %603
          %v605 = vadd.f32 %v601, %v604
          %606 = vst.msk [vmem:[#allocation3] sm:$0xf] %vm599, %v605
        $region72: #{tpu_custom_call.1} parent=51 // pred_fallthru
          _
        %p607 = scmp.eq.s32.totalorder %s40, 1
        // Predicated region
        $region73: #{tpu_custom_call.1} parent=51 // pred_check
          %p608 = pneg %p607
        $region74: #{tpu_custom_call.1} parent=51 // pred_check_branch
          %610 = sbr.rel (%p608) target = $region76
        $region75: #{tpu_custom_call.1} parent=51 // pred_region
          %s611 = sld [smem:[#allocation10]]
          %s612 = sld [smem:[#allocation10 + $0x1]]
          %v613 = vld [vmem:[#allocation2] sm:$0xf]
          %v614 = vmul.f32 %v613, 0.00390625
          %v615 = vstv %s611
          %v616 = vmul.f32 %v615, %v614
          %v617 = vstv %s612
          %v618 = vadd.f32 %v616, %v617
          %v619 = vxor.u32 %v618, 2147483648
          %v620 = vmul.f32 %v619, 1.442695
          %v621 = vpow.pop %v620
          %v622 = vadd.f32 %v621, 1.0
          %v623 = vrcp.pop %v622
          %v624 = vmul.f32 1.0, %v623
          %v625 = vld [vmem:[#allocation3] sm:$0xf]
          %v626 = vmul.f32 %v625, 0.00390625
          %v627 = vmul.f32 %v615, %v626
          %v628 = vadd.f32 %v627, %v617
          %v629 = vxor.u32 %v628, 2147483648
          %v630 = vmul.f32 %v629, 1.442695
          %v631 = vpow.pop %v630
          %v632 = vadd.f32 %v631, 1.0
          %v633 = vrcp.pop %v632
          %v634 = vmul.f32 1.0, %v633
          %v635 = vsub.f32 %v478, %v479
          %v636 = vld [vmem:[%s3] sm:$0xf]
          %638 = vset.pattern.permute.xlu0 0
          %639 = vperm.xlu0 %638, %v636
          %v640 = vpop.permute.xlu0 %639
          %v642 = vlaneseq
          %v643 = vshrl.u32 %v642, 7
          %v644 = vsub.s32 0, %v643
          %v645 = vrot.slane %v635, %v644
          %v646 = vmul.f32 %v640, %v645
          %647 = vset.pattern.permute.xlu0 1
          %648 = vperm.xlu0 %647, %v636
          %v649 = vpop.permute.xlu0 %648
          %v651 = vlaneseq
          %v652 = vshrl.u32 %v651, 7
          %v653 = vsub.s32 1, %v652
          %v654 = vrot.slane %v635, %v653
          %v655 = vmul.f32 %v649, %v654
          %v656 = vadd.f32 %v646, %v655
          %657 = vset.pattern.permute.xlu0 2
          %658 = vperm.xlu0 %657, %v636
          %v659 = vpop.permute.xlu0 %658
          %v661 = vlaneseq
          %v662 = vshrl.u32 %v661, 7
          %v663 = vsub.s32 2, %v662
          %v664 = vrot.slane %v635, %v663
          %v665 = vmul.f32 %v659, %v664
          %v666 = vadd.f32 %v656, %v665
          %667 = vset.pattern.permute.xlu0 3
          %668 = vperm.xlu0 %667, %v636
          %v669 = vpop.permute.xlu0 %668
          %v671 = vlaneseq
          %v672 = vshrl.u32 %v671, 7
          %v673 = vsub.s32 3, %v672
          %v674 = vrot.slane %v635, %v673
          %v675 = vmul.f32 %v669, %v674
          %v676 = vadd.f32 %v666, %v675
          %v677 = vld [vmem:[%s4] sm:$0xf]
          %679 = vset.pattern.permute.xlu0 0
          %680 = vperm.xlu0 %679, %v677
          %v681 = vpop.permute.xlu0 %680
          %v683 = vadd.f32 %v676, %v681
          %v684 = vmax.f32 %v683, 0.0
          %v685 = vsub.f32 %v478, %v480
          %v686 = vld [vmem:[%s5] sm:$0xf]
          %688 = vset.pattern.permute.xlu0 0
          %689 = vperm.xlu0 %688, %v686
          %v690 = vpop.permute.xlu0 %689
          %v692 = vlaneseq
          %v693 = vshrl.u32 %v692, 7
          %v694 = vsub.s32 0, %v693
          %v695 = vrot.slane %v685, %v694
          %v696 = vmul.f32 %v690, %v695
          %697 = vset.pattern.permute.xlu0 1
          %698 = vperm.xlu0 %697, %v686
          %v699 = vpop.permute.xlu0 %698
          %v701 = vlaneseq
          %v702 = vshrl.u32 %v701, 7
          %v703 = vsub.s32 1, %v702
          %v704 = vrot.slane %v685, %v703
          %v705 = vmul.f32 %v699, %v704
          %v706 = vadd.f32 %v696, %v705
          %707 = vset.pattern.permute.xlu0 2
          %708 = vperm.xlu0 %707, %v686
          %v709 = vpop.permute.xlu0 %708
          %v711 = vlaneseq
          %v712 = vshrl.u32 %v711, 7
          %v713 = vsub.s32 2, %v712
          %v714 = vrot.slane %v685, %v713
          %v715 = vmul.f32 %v709, %v714
          %v716 = vadd.f32 %v706, %v715
          %717 = vset.pattern.permute.xlu0 3
          %718 = vperm.xlu0 %717, %v686
          %v719 = vpop.permute.xlu0 %718
          %v721 = vlaneseq
          %v722 = vshrl.u32 %v721, 7
          %v723 = vsub.s32 3, %v722
          %v724 = vrot.slane %v685, %v723
          %v725 = vmul.f32 %v719, %v724
          %v726 = vadd.f32 %v716, %v725
          %v727 = vld [vmem:[%s6] sm:$0xf]
          %729 = vset.pattern.permute.xlu0 0
          %730 = vperm.xlu0 %729, %v727
          %v731 = vpop.permute.xlu0 %730
          %v733 = vadd.f32 %v726, %v731
          %v734 = vmax.f32 %v733, 0.0
          %v735 = vadd.f32 %v624, 1.0
          %737 = vset.pattern.permute.xlu0 0
          %738 = vperm.xlu0 %737, %v735
          %v739 = vpop.permute.xlu0 %738
          %v741 = vmul.f32 %v684, %v739
          %v742 = vadd.f32 %v741, %v479
          %743 = vst [vmem:[%s460] sm:$0xf] %v742
          %v744 = vadd.f32 %v634, 1.0
          %746 = vset.pattern.permute.xlu0 0
          %747 = vperm.xlu0 %746, %v744
          %v748 = vpop.permute.xlu0 %747
          %v750 = vmul.f32 %v734, %v748
          %v751 = vadd.f32 %v750, %v480
          %752 = vst [vmem:[%s467] sm:$0xf] %v751
        $region76: #{tpu_custom_call.1} parent=51 // pred_fallthru
          _
        %s753 = sand.u32 %s254, 1
        %s754 = scalar_lea.sflag [#allocation6], %s753
        %s755 = sand.u32 %s254, 1
        %s756 = smul.addr %s755, 4
        %s757 = scalar_lea.vmem [#allocation11], %s756
        %s758 = sand.u32 %s284, 1
        %s759 = scalar_lea.sflag [#allocation13], %s758
        %s760 = sand.u32 %s284, 1
        %s761 = smul.addr %s760, 4
        %s762 = scalar_lea.vmem [#allocation12], %s761
        // Predicated region
        $region77: #{tpu_custom_call.1} parent=51 // pred_check
          %p763 = pneg %p264
        $region78: #{tpu_custom_call.1} parent=51 // pred_check_branch
          %765 = sbr.rel (%p763) target = $region80
        $region79: #{tpu_custom_call.1} parent=51 // pred_region
          %s766 = smul.u32 %s41, %s40
          %s768 = ssub.s32 64, 64
          %769 = vsyncadd %s754, %s768
          %s770 = smul.addr %s39, 2
          %s771 = sadd.s32 %s766, %s770
          %s772 = smul.addr %s771, 64
          %s773 = scalar_lea.hbm %s8, %s772
          %s775 = sshll.u32 %s757, 4
          %s776 = int_to_ptr.vmem [resolvable:$true] %s775
          %778 = dma.vmem_to_hbm [thread:$0]  %s776, 64, %s773, %s754
        $region80: #{tpu_custom_call.1} parent=51 // pred_fallthru
          _
        // Predicated region
        $region81: #{tpu_custom_call.1} parent=51 // pred_check
          %p779 = pneg %p294
        $region82: #{tpu_custom_call.1} parent=51 // pred_check_branch
          %781 = sbr.rel (%p779) target = $region84
        $region83: #{tpu_custom_call.1} parent=51 // pred_region
          %s782 = smul.u32 %s41, %s40
          %s784 = ssub.s32 64, 64
          %785 = vsyncadd %s759, %s784
          %s786 = smul.addr %s39, 2
          %s787 = sadd.s32 %s782, %s786
          %s788 = smul.addr %s787, 64
          %s789 = scalar_lea.hbm %s9, %s788
          %s791 = sshll.u32 %s762, 4
          %s792 = int_to_ptr.vmem [resolvable:$true] %s791
          %794 = dma.vmem_to_hbm [thread:$0]  %s792, 64, %s789, %s759
        $region84: #{tpu_custom_call.1} parent=51 // pred_fallthru
          _
      $region52: #{tpu_custom_call.1} parent=5 // pred_fallthru
        _
      %p795 = scmp.le.s32.totalorder 2, %s29
      // Predicated region
      $region85: #{tpu_custom_call.1} parent=5 // pred_check
        %p796 = pneg %p795
      $region86: #{tpu_custom_call.1} parent=5 // pred_check_branch
        %798 = sbr.rel (%p796) target = $region88
      $region87: #{tpu_custom_call.1} parent=5 // pred_region
        %s799 = ssub.s32 %s29, 2
        // Predicated region
        $region89: #{tpu_custom_call.1} parent=87 // pred_check
          %p800 = pneg %p270
        $region90: #{tpu_custom_call.1} parent=87 // pred_check_branch
          %802 = sbr.rel (%p800) target = $region92
        $region91: #{tpu_custom_call.1} parent=87 // pred_region
          %s803 = sand.u32 %s255, 1
          %s804 = scalar_lea.sflag [#allocation6], %s803
          %s805 = sand.u32 %s255, 1
          %s806 = smul.addr %s805, 4
          %s807 = scalar_lea.vmem [#allocation11], %s806
          %808 = dma.done %s804, 64
        $region92: #{tpu_custom_call.1} parent=87 // pred_fallthru
          _
        // Predicated region
        $region93: #{tpu_custom_call.1} parent=87 // pred_check
          %p809 = pneg %p300
        $region94: #{tpu_custom_call.1} parent=87 // pred_check_branch
          %811 = sbr.rel (%p809) target = $region96
        $region95: #{tpu_custom_call.1} parent=87 // pred_region
          %s812 = sand.u32 %s285, 1
          %s813 = scalar_lea.sflag [#allocation13], %s812
          %s814 = sand.u32 %s285, 1
          %s815 = smul.addr %s814, 4
          %s816 = scalar_lea.vmem [#allocation12], %s815
          %817 = dma.done %s813, 64
        $region96: #{tpu_custom_call.1} parent=87 // pred_fallthru
          _
      $region88: #{tpu_custom_call.1} parent=5 // pred_fallthru
        _
    $region6: #{tpu_custom_call.1} parent=1 // loop_footer
      %s33 = sadd.s32 1, %s29
    $region7: #{tpu_custom_call.1} parent=1 // loop_footer_branch
      %28 = sbr.rel target = $region3
    $region8: #{tpu_custom_call.1} parent=1 // loop_exit
      _
    %818 = vsyncpa [#allocation5], 1
    %s819 = scalar_lea.sflag [#allocation5], 1
    %820 = vsyncpa %s819, 1
    %821 = vsyncpa [#allocation9], 1
    %s822 = scalar_lea.sflag [#allocation9], 1
    %823 = vsyncpa %s822, 1
    %824 = vsyncpa [#allocation6], 1
    %s825 = scalar_lea.sflag [#allocation6], 1
    %826 = vsyncpa %s825, 1
    %827 = vsyncpa [#allocation13], 1
    %s828 = scalar_lea.sflag [#allocation13], 1
    %829 = vsyncpa %s828, 1
    %830 = vsyncpa [#allocation7], 1
    %s831 = scalar_lea.sflag [#allocation7], 1
    %832 = vsyncpa %s831, 1

</llo_original>
